<compile_context>
chip_gen: v7x
topology: tpu7x:2x2x1
jax: 0.10.0
libtpu: 0.0.40
codegen_flags: <defaults>
</compile_context>

<pallas_src>
import jax
import jax.numpy as jnp
from jax.experimental import pallas as pl
from jax.experimental.pallas import tpu as pltpu


def _model_kernel(x_ref, wT_ref, b_ref, o_ref):
    # x_ref:  (2, 2) f32   input
    # wT_ref: (2, 3) f32   weight transposed (W^T), row k == W[:, k]
    # b_ref:  (1, 3) f32   bias
    # o_ref:  (8, 3) f32   output slab == rows [y0, y1] tiled 4x along sublanes
    x0 = x_ref[:, 0:1]     # (2, 1)  column 0 of x
    x1 = x_ref[:, 1:2]     # (2, 1)  column 1 of x
    w0 = wT_ref[0:1, :]    # (1, 3)  W[:, 0]
    w1 = wT_ref[1:2, :]    # (1, 3)  W[:, 1]
    b = b_ref[...]         # (1, 3)

    # Unrolled K=2 multiply-add on the VPU; bias is the accumulator init.
    y = b + x0 * w0 + x1 * w1                       # (2, 3) == x @ W^T + b

    # expand(2,2,3) + cat dim0 -> (4,2,3) is just 4 copies of y stacked along
    # the leading axis; emit it as one (8,3) sublane slab in a single store.
    o_ref[...] = jnp.concatenate([y, y, y, y], axis=0)   # (8, 3)


def make_model_forward(weight, bias):
    """Bind the Linear(2,3) parameters once (inference-style); only x is a
    per-call runtime input."""
    wT = jnp.asarray(weight, dtype=jnp.float32).T          # (2, 3), done once
    b2 = jnp.asarray(bias, dtype=jnp.float32)[None, :]     # (1, 3), done once

    @jax.jit
    def forward(x):
        slab = pl.pallas_call(
            _model_kernel,
            out_shape=jax.ShapeDtypeStruct((8, 3), jnp.float32),
            in_specs=[
                pl.BlockSpec(memory_space=pltpu.MemorySpace.VMEM),  # x
                pl.BlockSpec(memory_space=pltpu.MemorySpace.VMEM),  # W^T
                pl.BlockSpec(memory_space=pltpu.MemorySpace.VMEM),  # bias
            ],
            out_specs=pl.BlockSpec(memory_space=pltpu.MemorySpace.VMEM),
        )(x, wT, b2)
        # (8,3) row-major == (4,2,3) row-major: free metadata-only reshape.
        return slab.reshape(4, 2, 3)

    return forward


if __name__ == "__main__":
    key = jax.random.PRNGKey(0)
    kx, kw, kb = jax.random.split(key, 3)

    # Input consistent with the module: x = torch.randn(2, 2)
    x = jax.random.normal(kx, (2, 2), dtype=jnp.float32)

    # Deterministic parameter init for nn.Linear(2, 3):
    # weight (3,2), bias (3,), uniform(-1/sqrt(in), 1/sqrt(in)) like PyTorch.
    bound = 1.0 / jnp.sqrt(2.0)
    weight = jax.random.uniform(kw, (3, 2), dtype=jnp.float32,
                                minval=-bound, maxval=bound)
    bias = jax.random.uniform(kb, (3,), dtype=jnp.float32,
                              minval=-bound, maxval=bound)

    model_forward = make_model_forward(weight, bias)
    out = model_forward(x)
    out = jax.block_until_ready(out)

    # Pure-JAX reference for correctness check.
    y_ref = x @ weight.T + bias                                    # (2, 3)
    ref = jnp.concatenate(
        [jnp.broadcast_to(y_ref[None], (2, 2, 3))] * 2, axis=0)    # (4, 2, 3)

    assert out.shape == (4, 2, 3), out.shape
    assert jnp.allclose(out, ref, atol=1e-5, rtol=1e-5), "mismatch vs reference"
    print("KERNEL_OK")
</pallas_src>

<mosaic_0001>
module attributes {stable_mosaic.version = 11 : i64} {
  func.func @_model_kernel(%arg0: memref<2x2xf32, #tpu.memory_space<vmem>>, %arg1: memref<2x3xf32, #tpu.memory_space<vmem>>, %arg2: memref<1x3xf32, #tpu.memory_space<vmem>>, %arg3: memref<8x3xf32, #tpu.memory_space<vmem>>) attributes {dimension_semantics = [], scalar_prefetch = 0 : i64, scratch_operands = 0 : i64, tpu.core_type = #tpu.core_type<tc>} {
    %c0 = arith.constant 0 : index
    %c0_0 = arith.constant 0 : index
    %0 = vector.load %arg0[%c0, %c0_0] : memref<2x2xf32, #tpu.memory_space<vmem>>, vector<2x1xf32>
    %c0_1 = arith.constant 0 : index
    %c1 = arith.constant 1 : index
    %1 = vector.load %arg0[%c0_1, %c1] : memref<2x2xf32, #tpu.memory_space<vmem>>, vector<2x1xf32>
    %c0_2 = arith.constant 0 : index
    %c0_3 = arith.constant 0 : index
    %2 = vector.load %arg1[%c0_2, %c0_3] : memref<2x3xf32, #tpu.memory_space<vmem>>, vector<1x3xf32>
    %c1_4 = arith.constant 1 : index
    %c0_5 = arith.constant 0 : index
    %3 = vector.load %arg1[%c1_4, %c0_5] : memref<2x3xf32, #tpu.memory_space<vmem>>, vector<1x3xf32>
    %c0_6 = arith.constant 0 : index
    %c0_7 = arith.constant 0 : index
    %4 = vector.load %arg2[%c0_6, %c0_7] : memref<1x3xf32, #tpu.memory_space<vmem>>, vector<1x3xf32>
    %5 = vector.broadcast %0 : vector<2x1xf32> to vector<2x3xf32>
    %6 = vector.broadcast %2 : vector<1x3xf32> to vector<2x3xf32>
    %7 = arith.mulf %5, %6 : vector<2x3xf32>
    %8 = vector.broadcast %4 : vector<1x3xf32> to vector<2x3xf32>
    %9 = arith.addf %8, %7 : vector<2x3xf32>
    %10 = vector.broadcast %1 : vector<2x1xf32> to vector<2x3xf32>
    %11 = vector.broadcast %3 : vector<1x3xf32> to vector<2x3xf32>
    %12 = arith.mulf %10, %11 : vector<2x3xf32>
    %13 = arith.addf %9, %12 : vector<2x3xf32>
    %14 = tpu.concatenate %13, %13, %13, %13 in 0 : vector<2x3xf32>, vector<2x3xf32>, vector<2x3xf32>, vector<2x3xf32> -> vector<8x3xf32>
    %c0_8 = arith.constant 0 : index
    %c0_9 = arith.constant 0 : index
    %15 = vector.load %arg3[%c0_8, %c0_9] : memref<8x3xf32, #tpu.memory_space<vmem>>, vector<8x3xf32>
    tpu.vector_store %arg3[%c0_8, %c0_9], %14 {strides = array<i32>} : memref<8x3xf32, #tpu.memory_space<vmem>>, vector<8x3xf32>,
    return
  }
}

</mosaic_0001>

<llo_original>
// kernel: forward.1
$region0: #{forward.1}
  #allocation0 [shape = 'u32[]', space=smem, size = 0x4, offset = 0x4, fixed_abs, tag = 'smem constant byte address 0x4 - core index']
  #allocation1 [shape = 'u32[144,128]{1,0:T(1,128)}', space=vmem, size = 0x12000, scoped, tag = 'internal scratch']
  %s0 = inlined_call_operand.hbm [shape: f32[2,2], index: 0, kind: input, shape index: {}]
  %s1 = inlined_call_operand.vmem [shape: f32[2,3], index: 1, kind: input, shape index: {}]
  %s2 = inlined_call_operand.vmem [shape: f32[1,3], index: 2, kind: input, shape index: {}]
  %s3 = inlined_call_operand.vmem [shape: f32[8,3], index: 3, kind: output, shape index: {}]
  %s4 = sld [smem:[#allocation0]]
  $region26: #{forward.1} parent=0
    _
  %s6 = ssub.s32 1, %s4
  %s7 = scalar_select 0, %s6, %s4
  $region1: #{forward.1} parent=0
    #allocation2 [shape = 'u8[1024]{0}', space=vmem, size = 0x400, scoped, tag = 'input window, operand 0, single buffered']
    #allocation3 [shape = 's32[1]{0}', space=sflag, size = 0x4, scoped, tag = 'scoped memory for forward.1']
    %8 = vsyncpa [#allocation3], 0
    // Predicated region
    $region2: #{forward.1} parent=1 // pred_check
      _
    $region3: #{forward.1} parent=1 // pred_check_branch
      %10 = sbr.rel (0) target = $region5
    $region4: #{forward.1} parent=1 // pred_region
      %s12 = ssub.s32 32, 32
      %13 = vsyncadd [#allocation3], %s12
      %s15 = sshll.u32 [#allocation2], 4
      %s16 = int_to_ptr.vmem [resolvable:$true] %s15
      %18 = dma.hbm_to_vmem [thread:$0]  %s0, 32, %s16, [#allocation3]
    $region5: #{forward.1} parent=1 // pred_fallthru
      _
    // Predicated region
    $region6: #{forward.1} parent=1 // pred_check
      _
    $region7: #{forward.1} parent=1 // pred_check_branch
      %20 = sbr.rel (0) target = $region9
    $region8: #{forward.1} parent=1 // pred_region
      _
    $region9: #{forward.1} parent=1 // pred_fallthru
      _
    // Predicated region
    $region10: #{forward.1} parent=1 // pred_check
      _
    $region11: #{forward.1} parent=1 // pred_check_branch
      %22 = sbr.rel (0) target = $region13
    $region12: #{forward.1} parent=1 // pred_region
      _
    $region13: #{forward.1} parent=1 // pred_fallthru
      _
    // Predicated region
    $region14: #{forward.1} parent=1 // pred_check
      _
    $region15: #{forward.1} parent=1 // pred_check_branch
      %24 = sbr.rel (0) target = $region17
    $region16: #{forward.1} parent=1 // pred_region
      %25 = dma.done [#allocation3], 32
    $region17: #{forward.1} parent=1 // pred_fallthru
      _
    %v26 = vld [vmem:[#allocation2] sm:$0x3]
    %v27 = vld [vmem:[%s1] sm:$0x1]
    %v28 = vld [vmem:[%s1 + $0x1] sm:$0x1]
    %v29 = vld [vmem:[%s2] sm:$0x1]
    %31 = vset.pattern.permute.xlu0 0
    %32 = vperm.xlu0 %31, %v26
    %v33 = vpop.permute.xlu0 %32
    %v35 = vlaneseq
    %v36 = vshrl.u32 %v35, 7
    %v37 = vsub.s32 0, %v36
    %v38 = vrot.slane %v27, %v37
    %v39 = vmul.f32 %v33, %v38
    %v41 = vlaneseq
    %v42 = vshrl.u32 %v41, 7
    %v43 = vsub.s32 0, %v42
    %v44 = vrot.slane %v29, %v43
    %v46 = vadd.f32 %v44, %v39
    %47 = vset.pattern.permute.xlu0 1
    %48 = vperm.xlu0 %47, %v26
    %v49 = vpop.permute.xlu0 %48
    %v51 = vlaneseq
    %v52 = vshrl.u32 %v51, 7
    %v53 = vsub.s32 0, %v52
    %v54 = vrot.slane %v28, %v53
    %v55 = vmul.f32 %v49, %v54
    %v56 = vadd.f32 %v46, %v55
    %v58 = vrot.slane %v56, 6
    %v60 = vrot.slane %v56, 4
    %v62 = vrot.slane %v56, 2
    %vm64 = vcmask 1041408
    %v65 = vsel %vm64, %v56, %v58
    %vm66 = vcmask 1043456
    %v67 = vsel %vm66, %v65, %v60
    %vm68 = vcmask 1045504
    %v69 = vsel %vm68, %v67, %v62
    %vm70 = vcmask 23552
    %71 = vst.msk [vmem:[%s3] sm:$0xff] %vm70, %v69
    // Predicated region
    $region18: #{forward.1} parent=1 // pred_check
      _
    $region19: #{forward.1} parent=1 // pred_check_branch
      %73 = sbr.rel (0) target = $region21
    $region20: #{forward.1} parent=1 // pred_region
      _
    $region21: #{forward.1} parent=1 // pred_fallthru
      _
    // Predicated region
    $region22: #{forward.1} parent=1 // pred_check
      _
    $region23: #{forward.1} parent=1 // pred_check_branch
      %75 = sbr.rel (0) target = $region25
    $region24: #{forward.1} parent=1 // pred_region
      _
    $region25: #{forward.1} parent=1 // pred_fallthru
      _
    %76 = vsyncpa [#allocation3], 1

</llo_original>
